<compile_context>
chip_gen: v6e
topology: v6e:2x2x1
jax: 0.10.0
libtpu: 0.0.40
codegen_flags: <defaults>
</compile_context>

<pallas_src>
import math

import jax
import jax.numpy as jnp
from jax.experimental import pallas as pl
from jax.experimental.pallas import tpu as pltpu


# ---------------------------------------------------------------------------
# Backward Pallas kernel: grad_in = -lambda * grad_out
# ---------------------------------------------------------------------------
_TARGET_BLOCK_BYTES = 8 << 20          # ~8 MiB blocks -> grid-step overhead of a few %
_LANE_CANDIDATES = (4096, 2048, 1024, 512, 256, 128)


def _neg_scale_kernel(lam_ref, g_ref, o_ref):
    # lam_ref is a (1,) f32 scalar living in SMEM (runtime value -> no retrace /
    # Mosaic recompile when the GRL lambda schedule is ramped per step).
    # The multiply runs on the VPU, which has enormous slack in this mem-bound op.
    lam = lam_ref[0]
    o_ref[...] = (g_ref[...] * (-lam)).astype(o_ref.dtype)


def _choose_2d(total, shape):
    """Pick a copy-free 2-D view (rows, cols) with rows * cols == total.

    Prefer a lane-dense cols (multiple of 128) with >= 8 rows so stores are full,
    unmasked vst. Otherwise fall back to the natural trailing dim: BlockSpec allows
    a non-128-multiple lane extent when it equals the full array dim.
    """
    for cols in _LANE_CANDIDATES:
        if total % cols == 0 and total // cols >= 8:
            return total // cols, cols
    for cols in _LANE_CANDIDATES:
        if total % cols == 0:
            return total // cols, cols
    if len(shape) >= 2:
        return math.prod(shape[:-1]), shape[-1]
    return 1, total


def _pick_tm(rows, cols, itemsize):
    """Rows per block: target ~8 MiB blocks while keeping >= 4 grid steps.

    >= 4 steps gives DMA/compute/writeback pipelining and lets
    dimension_semantics=('parallel',) shard the axis across v7x's 2 TensorCores.
    """
    sub = max(8, 32 // itemsize)          # sublane multiple: 8 f32 / 16 bf16 / 32 i8
    cap = max(sub, (_TARGET_BLOCK_BYTES // (cols * itemsize)) // sub * sub)
    if rows < 4 * sub:
        return rows                        # tiny tensor: one full-row-extent block
    quarter = -(-rows // 4)                # ceil(rows / 4)
    quarter = -(-quarter // sub) * sub     # round up to sublane multiple
    return max(sub, min(cap, quarter))


def _neg_scale_pallas(g, lambd):
    """Compute -lambd * g with a grid-tiled, lane-dense Pallas TPU kernel.

    The gradient is reshaped (free, contiguous) into a 2-D view — no jnp.pad and
    no post-slice, so HBM traffic stays at the 1-read + 1-write floor. The ragged
    trailing row block (when tm does not divide rows) is masked by Pallas.

    NOTE: if the upstream gradient is not already materialized in HBM, a plain
    `-lambd * g` that XLA fuses into its producer would avoid even this round
    trip; the standalone kernel is kept per the exercise.
    """
    orig_shape = g.shape
    total = math.prod(orig_shape) if orig_shape else 1
    if total == 0:
        return g

    rows, cols = _choose_2d(total, orig_shape)
    g2d = g.reshape(rows, cols)            # contiguous reshape: no copy

    itemsize = jnp.dtype(g.dtype).itemsize
    tm = _pick_tm(rows, cols, itemsize)
    num_blocks = pl.cdiv(rows, tm)
    block_bytes = tm * cols * itemsize
    # in + out, double-buffered, plus headroom; computed from actual need and
    # capped well under v7x's 64 MiB physical VMEM per TensorCore.
    vmem_limit = int(min(max(4 * block_bytes + (4 << 20), 16 << 20), 48 << 20))

    lam_arr = jnp.asarray(lambd, jnp.float32).reshape(1)

    out2d = pl.pallas_call(
        _neg_scale_kernel,
        out_shape=jax.ShapeDtypeStruct((rows, cols), g.dtype),
        grid=(num_blocks,),
        in_specs=[
            pl.BlockSpec(memory_space=pltpu.MemorySpace.SMEM),   # lambda scalar
            pl.BlockSpec((tm, cols), lambda i: (i, 0)),
        ],
        out_specs=pl.BlockSpec((tm, cols), lambda i: (i, 0)),
        compiler_params=pltpu.CompilerParams(
            # Mem-bound elementwise op: shard the grid axis across both v7x
            # TensorCores (no-op on single-TC v5e/v6e).
            dimension_semantics=("parallel",),
            vmem_limit_bytes=vmem_limit,
        ),
    )(lam_arr, g2d)

    return out2d.reshape(orig_shape)


# ---------------------------------------------------------------------------
# GRL: identity forward, gradient-reversing backward (custom VJP)
# ---------------------------------------------------------------------------
@jax.custom_vjp
def grl(x, lambd=0.1):
    # Forward is a pure identity: no kernel, no copy (matches x.view_as(x)).
    return x


def _grl_fwd(x, lambd):
    return x, lambd


def _grl_bwd(lambd, g):
    dx = _neg_scale_pallas(g, lambd)
    # PyTorch returns None for the lambda grad; closest JAX equivalent is a zero
    # cotangent (lambda is a float hyperparameter, possibly a traced schedule).
    dlam = jnp.zeros_like(jnp.asarray(lambd))
    return dx, dlam


grl.defvjp(_grl_fwd, _grl_bwd)


class GRL:
    """JAX/Pallas counterpart of the PyTorch GRL module.

    `lambd` may be a Python float or a (traced) scalar array — e.g. a per-step
    ramp schedule — without triggering a kernel recompile.
    """

    def __init__(self, lambd=0.1):
        self.lambd = lambd

    def __call__(self, x):
        return grl(x, self.lambd)


# ---------------------------------------------------------------------------
# Demo / smoke test
# ---------------------------------------------------------------------------
if __name__ == "__main__":
    key = jax.random.PRNGKey(0)
    # Small NCHW input consistent with a feature map: batch=2, channels=4, 16x16.
    x = jax.random.normal(key, (2, 4, 16, 16), dtype=jnp.float32)

    module = GRL(lambd=0.1)

    # Forward: identity (no kernel launch, no copy).
    y = jax.block_until_ready(module(x))
    assert y.shape == x.shape and y.dtype == x.dtype
    assert bool(jnp.allclose(y, x)), "forward is not identity"

    # Backward: gradient reversal (-lambda * upstream gradient) via Pallas kernel.
    g = jax.grad(lambda x_: jnp.sum(grl(x_, 0.1) * 2.0))(x)
    g = jax.block_until_ready(g)
    assert bool(jnp.allclose(g, jnp.full_like(x, -0.2), atol=1e-6)), "backward mismatch"

    # Runtime (traced) lambda: schedule changes do NOT retrace / recompile.
    grad_fn = jax.jit(jax.grad(lambda x_, lam_: jnp.sum(grl(x_, lam_))))
    g03 = jax.block_until_ready(grad_fn(x, jnp.float32(0.3)))
    g05 = jax.block_until_ready(grad_fn(x, jnp.float32(0.5)))
    assert bool(jnp.allclose(g03, jnp.full_like(x, -0.3), atol=1e-6))
    assert bool(jnp.allclose(g05, jnp.full_like(x, -0.5), atol=1e-6))

    # Ragged / non-128-divisible shape: exercises the masked trailing-block path.
    x_odd = jax.random.normal(jax.random.PRNGKey(1), (5, 7, 96), jnp.float32)
    g_odd = jax.block_until_ready(jax.grad(lambda x_: jnp.sum(grl(x_, 0.1)))(x_odd))
    assert bool(jnp.allclose(g_odd, jnp.full_like(x_odd, -0.1), atol=1e-6))

    # Larger tensor: exercises the multi-block lane-dense grid path.
    x_big = jax.random.normal(jax.random.PRNGKey(2), (4, 32, 64, 64), jnp.float32)
    g_big = jax.block_until_ready(jax.grad(lambda x_: jnp.sum(grl(x_, 0.1)))(x_big))
    assert bool(jnp.allclose(g_big, jnp.full_like(x_big, -0.1), atol=1e-6))

    # bf16 gradient path (exercises the dtype cast and 16-row sublane multiple).
    x_bf = jax.random.normal(jax.random.PRNGKey(3), (2, 8, 128), jnp.bfloat16)
    g_bf = jax.grad(lambda x_: jnp.sum(grl(x_, 0.1).astype(jnp.float32)))(x_bf)
    g_bf = jax.block_until_ready(g_bf)
    assert bool(jnp.allclose(g_bf.astype(jnp.float32),
                             jnp.full(x_bf.shape, -0.1, jnp.float32), atol=1e-2))

    print("KERNEL_OK")
</pallas_src>

<mosaic_0001>
module attributes {stable_mosaic.version = 11 : i64} {
  func.func @_neg_scale_kernel(%arg0: i32, %arg1: memref<1xf32, #tpu.memory_space<smem>>, %arg2: memref<8x256xf32, #tpu.memory_space<vmem>>, %arg3: memref<8x256xf32, #tpu.memory_space<vmem>>) attributes {dimension_semantics = [#tpu.dimension_semantics<parallel>], iteration_bounds = array<i64: 1>, scalar_prefetch = 0 : i64, scratch_operands = 0 : i64, tpu.core_type = #tpu.core_type<tc>, window_params = [{transform_indices = @transform_0, window_bounds = array<i64: 1>}, {transform_indices = @transform_1, window_bounds = array<i64: 8, 256>}, {transform_indices = @transform_2, window_bounds = array<i64: 8, 256>}]} {
    %c0 = arith.constant 0 : index
    %0 = memref.load %arg1[%c0] : memref<1xf32, #tpu.memory_space<smem>>
    %c0_0 = arith.constant 0 : index
    %c0_1 = arith.constant 0 : index
    %1 = vector.load %arg2[%c0_0, %c0_1] : memref<8x256xf32, #tpu.memory_space<vmem>>, vector<8x256xf32>
    %cst = arith.constant 0.000000e+00 : f32
    %2 = arith.subf %cst, %0 : f32
    %3 = vector.broadcast %2 : f32 to vector<8x256xf32>
    %4 = arith.mulf %1, %3 : vector<8x256xf32>
    %c0_2 = arith.constant 0 : index
    %c0_3 = arith.constant 0 : index
    %5 = vector.load %arg3[%c0_2, %c0_3] : memref<8x256xf32, #tpu.memory_space<vmem>>, vector<8x256xf32>
    tpu.vector_store %arg3[%c0_2, %c0_3], %4 {strides = array<i32>} : memref<8x256xf32, #tpu.memory_space<vmem>>, vector<8x256xf32>,
    return
  }
  func.func @transform_0(%arg0: i32) -> i32 {
    %c0_i32 = arith.constant 0 : i32
    %c0_i32_0 = arith.constant 0 : i32
    return %c0_i32 : i32
  }
  func.func @transform_1(%arg0: i32) -> (i32, i32) {
    %c0_i32 = arith.constant 0 : i32
    %c0_i32_0 = arith.constant 0 : i32
    return %arg0, %c0_i32 : i32, i32
  }
  func.func @transform_2(%arg0: i32) -> (i32, i32) {
    %c0_i32 = arith.constant 0 : i32
    %c0_i32_0 = arith.constant 0 : i32
    return %arg0, %c0_i32 : i32, i32
  }
}

</mosaic_0001>

<llo_original>
// kernel: tpu_custom_call.1
$region0: #{tpu_custom_call.1}
  #allocation0 [shape = 'u32[]', space=smem, size = 0x4, offset = 0x4, fixed_abs, tag = 'smem constant byte address 0x4 - core index']
  #allocation1 [shape = 'u32[144,128]{1,0:T(1,128)}', space=vmem, size = 0x12000, scoped, tag = 'internal scratch']
  #allocation2 [shape = 'f32[1]{0:T(128)S(6)}', space=smem, size = 0x200, scoped, tag = 'scoped memory for tpu_custom_call.1']
  %s0 = inlined_call_operand.<no memory space> [shape: f32[1], index: 0, kind: input, shape index: {}]
  %s1 = inlined_call_operand.hbm [shape: f32[8,256], index: 1, kind: input, shape index: {}]
  %s2 = inlined_call_operand.hbm [shape: f32[8,256], index: 2, kind: output, shape index: {}]
  %s3 = sld [smem:[#allocation0]]
  $region22: #{tpu_custom_call.1} parent=0
    _
  %s5 = ssub.s32 1, %s3
  %s6 = scalar_select 0, %s5, %s3
  %7 = sst [smem:[#allocation2]] %s0
  $region1: #{tpu_custom_call.1} parent=0
    #allocation3 [shape = 'u8[8192]{0}', space=vmem, size = 0x2000, scoped, tag = 'input window, operand 1, single buffered']
    #allocation4 [shape = 's32[1]{0}', space=sflag, size = 0x4, scoped, tag = 'scoped memory for tpu_custom_call.1']
    #allocation5 [shape = 's32[1]{0}', space=sflag, size = 0x4, scoped, tag = 'scoped memory for tpu_custom_call.1']
    #allocation6 [shape = 'u8[8192]{0}', space=vmem, size = 0x2000, scoped, tag = 'output window, operand 0, single buffered']
    %8 = vsyncpa [#allocation4], 0
    %9 = vsyncpa [#allocation5], 0
    // Predicated region
    $region2: #{tpu_custom_call.1} parent=1 // pred_check
      _
    $region3: #{tpu_custom_call.1} parent=1 // pred_check_branch
      %11 = sbr.rel (0) target = $region5
    $region4: #{tpu_custom_call.1} parent=1 // pred_region
      _
    $region5: #{tpu_custom_call.1} parent=1 // pred_fallthru
      _
    // Predicated region
    $region6: #{tpu_custom_call.1} parent=1 // pred_check
      _
    $region7: #{tpu_custom_call.1} parent=1 // pred_check_branch
      %13 = sbr.rel (0) target = $region9
    $region8: #{tpu_custom_call.1} parent=1 // pred_region
      %s15 = ssub.s32 256, 256
      %16 = vsyncadd [#allocation4], %s15
      %s18 = sshll.u32 [#allocation3], 4
      %s19 = int_to_ptr.vmem [resolvable:$true] %s18
      %21 = dma.hbm_to_vmem [thread:$0]  %s1, 256, %s19, [#allocation4]
    $region9: #{tpu_custom_call.1} parent=1 // pred_fallthru
      _
    // Predicated region
    $region10: #{tpu_custom_call.1} parent=1 // pred_check
      _
    $region11: #{tpu_custom_call.1} parent=1 // pred_check_branch
      %23 = sbr.rel (0) target = $region13
    $region12: #{tpu_custom_call.1} parent=1 // pred_region
      %24 = dma.done [#allocation4], 256
    $region13: #{tpu_custom_call.1} parent=1 // pred_fallthru
      _
    %s25 = sld [smem:[#allocation2]]
    %v26 = vld [vmem:[#allocation3] sm:$0xff]
    %v27 = vld [vmem:[#allocation3 + $0x8] sm:$0xff]
    %s28 = ssub.f32 0.0, %s25
    %v29 = vstv %s28
    %v30 = vmul.f32 %v26, %v29
    %v31 = vmul.f32 %v27, %v29
    %32 = vst [vmem:[#allocation6] sm:$0xff] %v30
    %33 = vst [vmem:[#allocation6 + $0x8] sm:$0xff] %v31
    // Predicated region
    $region14: #{tpu_custom_call.1} parent=1 // pred_check
      _
    $region15: #{tpu_custom_call.1} parent=1 // pred_check_branch
      %35 = sbr.rel (0) target = $region17
    $region16: #{tpu_custom_call.1} parent=1 // pred_region
      %s37 = ssub.s32 256, 256
      %38 = vsyncadd [#allocation5], %s37
      %s40 = sshll.u32 [#allocation6], 4
      %s41 = int_to_ptr.vmem [resolvable:$true] %s40
      %43 = dma.vmem_to_hbm [thread:$0]  %s41, 256, %s2, [#allocation5]
    $region17: #{tpu_custom_call.1} parent=1 // pred_fallthru
      _
    // Predicated region
    $region18: #{tpu_custom_call.1} parent=1 // pred_check
      _
    $region19: #{tpu_custom_call.1} parent=1 // pred_check_branch
      %45 = sbr.rel (0) target = $region21
    $region20: #{tpu_custom_call.1} parent=1 // pred_region
      %46 = dma.done [#allocation5], 256
    $region21: #{tpu_custom_call.1} parent=1 // pred_fallthru
      _
    %47 = vsyncpa [#allocation4], 1
    %48 = vsyncpa [#allocation5], 1

</llo_original>
